<compile_context>
chip_gen: v7x
topology: tpu7x:2x2x1
jax: 0.10.0
libtpu: 0.0.40
codegen_flags: <defaults>
</compile_context>

<pallas_src>
import math

import jax
import jax.numpy as jnp
from jax.experimental import pallas as pl
from jax.experimental.pallas import tpu as pltpu


# ----------------------------------------------------------------------------- helpers


def _round_up(v: int, m: int) -> int:
    return ((v + m - 1) // m) * m


def _vmem_budget_bytes() -> int:
    """Per-generation VMEM budget (v5e/v6e: 128 MiB physical, v7x: 64 MiB per TC)."""
    try:
        cap = int(pltpu.get_tpu_info().vmem_capacity_bytes)
    except Exception:  # not on a TPU (e.g. interpret mode) -> assume the smallest (v7x)
        cap = 64 * 1024 * 1024
    # use at most 3/4 of physical VMEM, never more than 64 MiB
    return int(min((cap * 3) // 4, 64 * 1024 * 1024))


def _plan_dc_tiles(D: int, C: int, budget_bytes: int):
    """(D, C) padding and (tk, tn) tile sizes, sized against the VMEM budget."""
    D_pad = _round_up(D, 128)
    tk = min(1024, D_pad)
    D_pad = _round_up(D_pad, tk)

    C_pad = _round_up(C, 128)          # lane-dense output tiles
    tn = min(2048, C_pad)
    C_pad = _round_up(C_pad, tn)

    TM_MAX = 256

    def footprint(tk_, tn_):
        # double-buffered bf16 x / w tiles + double-buffered resident f32 output tile
        return 2 * (TM_MAX * tk_ * 2 + tk_ * tn_ * 2 + TM_MAX * tn_ * 4)

    while footprint(tk, tn) > budget_bytes and tn > 512:
        tn //= 2
    while footprint(tk, tn) > budget_bytes and tk > 512:
        tk //= 2
    return D_pad, C_pad, tk, tn


def _plan_m_tiles(B: int):
    """Batch padding/tile: large tm minimizes how often the (D,C) weight is re-streamed."""
    B_pad = _round_up(B, 16)           # bf16 sublane packing
    tm = min(256, B_pad)
    B_pad = _round_up(B_pad, tm)
    return B_pad, tm


def _pad2(a, rows: int, cols: int, value=0):
    return jnp.pad(a, ((0, rows - a.shape[0]), (0, cols - a.shape[1])),
                   constant_values=value)


# ----------------------------------------------------------------------------- kernels


def _make_train_kernel(margin: int):
    """Tiled matmul (accumulating into the resident f32 output tile) + gated
    large-margin correction epilogue on the last K step."""
    c_m_2n = [float(math.comb(margin, n)) for n in range(0, margin + 1, 2)]
    cos_powers = list(range(margin, -1, -2))            # m, m-2, ..., 1|0
    signs = [1.0 if i % 2 == 0 else -1.0 for i in range(len(cos_powers))]
    # k = floor(acos(cos)/(pi/m)) == #{ j in 1..m-1 : cos <= cos(j*pi/m) }  (no acos on-chip)
    k_thresholds = [math.cos(j * math.pi / margin) for j in range(1, margin)]
    eps = 1e-7

    def kernel(x_ref, w_ref, wn_ref, xn_ref, t_ref, beta_ref, flags_ref, o_ref):
        # All grid queries at the kernel top level (never inside a pl.when body).
        i_idx = pl.program_id(0)
        j_idx = pl.program_id(1)
        k_idx = pl.program_id(2)
        num_j = pl.num_programs(1)
        is_first_k = k_idx == 0
        is_last_k = k_idx == pl.num_programs(2) - 1

        tn_blk = o_ref.shape[1]
        col0 = j_idx * tn_blk
        # SMEM flag: does this (i, j) output tile contain any row's target column?
        tile_has_target = flags_ref[i_idx * num_j + j_idx] != 0

        @pl.when(is_first_k)
        def _():
            o_ref[...] = jnp.zeros_like(o_ref)

        # Accumulate directly into the resident f32 output tile (no VMEM scratch).
        o_ref[...] += jnp.dot(x_ref[...], w_ref[...],
                              preferred_element_type=jnp.float32)

        # Margin correction: last K step only, and only for tiles that hold a target.
        @pl.when(jnp.logical_and(is_last_k, tile_has_target))
        def _():
            logits = o_ref[...]                                    # (tm, tn) f32
            tm_, tn_ = logits.shape
            col_ids = jax.lax.broadcasted_iota(jnp.int32, (tm_, tn_), 1) + col0
            mask = col_ids == t_ref[...]                           # (tm, tn) bool

            x_norm = xn_ref[...]                                   # (tm, 1) f32
            w_norm_row = wn_ref[...]                               # (1,  tn) f32

            # logit[i, target[i]] and ||w[:, target[i]]|| for rows whose target lies
            # in this C tile (rows outside: 0, never selected by the final where).
            logit_t = jnp.sum(jnp.where(mask, logits, 0.0), axis=1, keepdims=True)
            w_t_norm = jnp.sum(jnp.where(mask, w_norm_row, 0.0), axis=1, keepdims=True)

            prod_norm = w_t_norm * x_norm                          # (tm, 1)
            # NOTE: logit_t is the bf16-MXU value (deliberate precision deviation from
            # the f32 PyTorch matmul); clamp BEFORE the power series so bf16 rounding
            # cannot push |cos| > 1 and flip odd sin^2 powers.
            cos_theta = logit_t / (prod_norm + 1e-10)
            cos_theta = jnp.clip(cos_theta, -1.0 + eps, 1.0 - eps)
            sin2_theta = 1.0 - cos_theta * cos_theta

            # cos(m*theta) via the unrolled binomial expansion (margin is static).
            cos_m_theta = jnp.zeros_like(cos_theta)
            for n in range(len(cos_powers)):
                cos_m_theta = cos_m_theta + (
                    signs[n] * c_m_2n[n]
                    * (cos_theta ** cos_powers[n]) * (sin2_theta ** n))

            # k and (-1)**k via static thresholds (replaces floor(acos(.)/divisor)).
            k_f = jnp.zeros_like(cos_theta)
            sign_k = jnp.ones_like(cos_theta)
            for thr in k_thresholds:
                crossed = cos_theta <= thr
                k_f = k_f + jnp.where(crossed, 1.0, 0.0)
                sign_k = jnp.where(crossed, -sign_k, sign_k)

            logit_t_new = prod_norm * (sign_k * cos_m_theta - 2.0 * k_f)
            beta = beta_ref[0, 0]                                  # runtime SMEM scalar
            blended = (logit_t_new + beta * logit_t) / (1.0 + beta)

            # single select: target column gets the blended value, rest untouched
            o_ref[...] = jnp.where(mask, blended, logits)

    return kernel


def _matmul_kernel(x_ref, w_ref, o_ref):
    """Plain tiled bf16 matmul, f32 accumulation directly into the output tile (eval)."""
    is_first_k = pl.program_id(2) == 0

    @pl.when(is_first_k)
    def _():
        o_ref[...] = jnp.zeros_like(o_ref)

    o_ref[...] += jnp.dot(x_ref[...], w_ref[...], preferred_element_type=jnp.float32)


# ----------------------------------------------------------------------------- module


class LSoftmaxLinearPallas:
    """JAX/Pallas reimplementation of LSoftmaxLinear.forward."""

    def __init__(self, input_features: int, output_features: int, margin: int, key):
        self.input_dim = input_features
        self.output_dim = output_features
        self.margin = margin
        self.beta = 100.0
        self.beta_min = 0.0
        self.scale = 0.99
        # kaiming-normal-ish deterministic init, stored as f32 master weights
        std = math.sqrt(2.0 / input_features)
        self.weight = std * jax.random.normal(
            key, (input_features, output_features), dtype=jnp.float32)

        budget = _vmem_budget_bytes()
        self._D_pad, self._C_pad, self._tk, self._tn = _plan_dc_tiles(
            input_features, output_features, budget)
        self._compiler_params = pltpu.CompilerParams(
            dimension_semantics=("parallel", "parallel", "arbitrary"),
            vmem_limit_bytes=budget,
        )
        self._train_kernel = _make_train_kernel(margin)   # margin is structural (static)

        # cached padded bf16 weight + f32 column norms; rebuilt only when weight changes
        self._w_cache_src = None
        self._w_bf = None
        self._w_norm = None

    # ---- cached weight-derived operands ------------------------------------------
    def _weight_operands(self):
        if self._w_cache_src is not self.weight:
            w32 = self.weight
            self._w_bf = _pad2(w32.astype(jnp.bfloat16), self._D_pad, self._C_pad)
            self._w_norm = _pad2(jnp.linalg.norm(w32, axis=0, keepdims=True),
                                 1, self._C_pad)
            self._w_cache_src = self.weight
        return self._w_bf, self._w_norm

    # ---- training forward: margin-adjusted logits ---------------------------------
    def _forward_train(self, x, target):
        B, D = x.shape
        C = self.output_dim
        D_pad, C_pad, tk, tn = self._D_pad, self._C_pad, self._tk, self._tn
        B_pad, tm = _plan_m_tiles(B)
        num_i, num_j = B_pad // tm, C_pad // tn
        grid = (num_i, num_j, D_pad // tk)   # reduction axis (K) innermost

        x32 = x.astype(jnp.float32)
        x_bf = _pad2(x32.astype(jnp.bfloat16), B_pad, D_pad)
        x_norm = _pad2(jnp.linalg.norm(x32, axis=1, keepdims=True), B_pad, 1)
        w_bf, w_norm = self._weight_operands()

        # padded rows get target -1 so they never match any column / set a flag
        tgt = _pad2(target.astype(jnp.int32).reshape(B, 1), B_pad, 1, value=-1)

        # per-(i, j) epilogue gating table: does output tile (i, j) hold any target?
        t_flat = tgt[:, 0]
        hit = jnp.logical_and(
            t_flat[:, None] // tn == jnp.arange(num_j, dtype=jnp.int32)[None, :],
            (t_flat >= 0)[:, None])                                  # (B_pad, num_j)
        flags = hit.reshape(num_i, tm, num_j).any(axis=1).astype(jnp.int32).reshape(-1)

        beta = max(self.beta, self.beta_min)
        beta_arr = jnp.full((1, 1), beta, dtype=jnp.float32)  # runtime scalar, no retrace

        out = pl.pallas_call(
            self._train_kernel,
            out_shape=jax.ShapeDtypeStruct((B_pad, C_pad), jnp.float32),
            grid=grid,
            in_specs=[
                pl.BlockSpec((tm, tk), lambda i, j, k: (i, k)),       # x (bf16)
                pl.BlockSpec((tk, tn), lambda i, j, k: (k, j)),       # w (bf16)
                pl.BlockSpec((1, tn), lambda i, j, k: (0, j)),        # ||w[:, c]||
                pl.BlockSpec((tm, 1), lambda i, j, k: (i, 0)),        # ||x_i||
                pl.BlockSpec((tm, 1), lambda i, j, k: (i, 0)),        # target ids
                pl.BlockSpec(memory_space=pltpu.MemorySpace.SMEM),    # beta scalar
                pl.BlockSpec(memory_space=pltpu.MemorySpace.SMEM),    # tile flags
            ],
            out_specs=pl.BlockSpec((tm, tn), lambda i, j, k: (i, j)),
            compiler_params=self._compiler_params,
        )(x_bf, w_bf, w_norm, x_norm, tgt, beta_arr, flags)

        self.beta *= self.scale  # host-side stateful decay, mirrors the PyTorch module
        return out[:B, :C]

    # ---- eval forward: plain (tiled) matmul ----------------------------------------
    def _forward_eval(self, x):
        B, D = x.shape
        C = self.output_dim
        D_pad, C_pad, tk, tn = self._D_pad, self._C_pad, self._tk, self._tn
        B_pad, tm = _plan_m_tiles(B)
        grid = (B_pad // tm, C_pad // tn, D_pad // tk)

        x_bf = _pad2(x.astype(jnp.bfloat16), B_pad, D_pad)
        w_bf, _ = self._weight_operands()

        out = pl.pallas_call(
            _matmul_kernel,
            out_shape=jax.ShapeDtypeStruct((B_pad, C_pad), jnp.float32),
            grid=grid,
            in_specs=[
                pl.BlockSpec((tm, tk), lambda i, j, k: (i, k)),
                pl.BlockSpec((tk, tn), lambda i, j, k: (k, j)),
            ],
            out_specs=pl.BlockSpec((tm, tn), lambda i, j, k: (i, j)),
            compiler_params=self._compiler_params,
        )(x_bf, w_bf)
        return out[:B, :C]

    def __call__(self, x, target=None, training=True):
        if training:
            assert target is not None
            return self._forward_train(x, target)
        assert target is None
        return self._forward_eval(x)


# ----------------------------------------------------------------------------- reference


def _reference_train(x, w, target, margin, beta):
    """Pure-JAX reference: same bf16 operand rounding, same clamp + threshold-k as kernel."""
    xb = x.astype(jnp.bfloat16).astype(jnp.float32)
    wb = w.astype(jnp.bfloat16).astype(jnp.float32)
    logits = xb @ wb
    idx = jnp.arange(x.shape[0])
    logit_t = logits[idx, target]
    w_t_norm = jnp.linalg.norm(w[:, target], axis=0)
    x_norm = jnp.linalg.norm(x, axis=1)
    eps = 1e-7
    cos_theta = logit_t / (w_t_norm * x_norm + 1e-10)
    cos_theta = jnp.clip(cos_theta, -1.0 + eps, 1.0 - eps)
    sin2 = 1.0 - cos_theta * cos_theta
    c_m_2n = [float(math.comb(margin, n)) for n in range(0, margin + 1, 2)]
    cos_powers = list(range(margin, -1, -2))
    cos_m = jnp.zeros_like(cos_theta)
    for n in range(len(cos_powers)):
        sign = 1.0 if n % 2 == 0 else -1.0
        cos_m = cos_m + sign * c_m_2n[n] * cos_theta ** cos_powers[n] * sin2 ** n
    # k = floor(acos(cos)/(pi/m)) via the same monotone-threshold counting as the kernel
    k = jnp.zeros_like(cos_theta)
    sign_k = jnp.ones_like(cos_theta)
    for j in range(1, margin):
        crossed = cos_theta <= math.cos(j * math.pi / margin)
        k = k + jnp.where(crossed, 1.0, 0.0)
        sign_k = jnp.where(crossed, -sign_k, sign_k)
    upd = w_t_norm * x_norm * (sign_k * cos_m - 2.0 * k)
    blended = (upd + beta * logit_t) / (1.0 + beta)
    return logits.at[idx, target].set(blended)


# ----------------------------------------------------------------------------- main


if __name__ == "__main__":
    key = jax.random.PRNGKey(0)
    k_w, k_x, k_t = jax.random.split(key, 3)

    B, D, C, MARGIN = 8, 32, 16, 4

    module = LSoftmaxLinearPallas(input_features=D, output_features=C,
                                  margin=MARGIN, key=k_w)

    x = jax.random.normal(k_x, (B, D), dtype=jnp.float32)
    target = jax.random.randint(k_t, (B,), 0, C, dtype=jnp.int32)

    beta_used = max(module.beta, module.beta_min)

    # training-mode forward (margin-adjusted logits)
    out_train = jax.block_until_ready(module(x, target=target, training=True))

    # eval-mode forward (plain matmul)
    out_eval = jax.block_until_ready(module(x, target=None, training=False))

    assert out_train.shape == (B, C) and out_eval.shape == (B, C)

    # correctness vs pure-JAX reference (same bf16 operand rounding)
    ref_train = _reference_train(x, module.weight, target, MARGIN, beta_used)
    ref_eval = (x.astype(jnp.bfloat16).astype(jnp.float32)
                @ module.weight.astype(jnp.bfloat16).astype(jnp.float32))

    assert jnp.allclose(out_eval, ref_eval, atol=2e-3, rtol=2e-3)
    assert jnp.allclose(out_train, ref_train, atol=2e-3, rtol=2e-3)

    print("KERNEL_OK")
</pallas_src>

<mosaic_0001>
module attributes {stable_mosaic.version = 11 : i64} {
  func.func @kernel(%arg0: i32, %arg1: i32, %arg2: i32, %arg3: memref<16x128xbf16, #tpu.memory_space<vmem>>, %arg4: memref<128x128xbf16, #tpu.memory_space<vmem>>, %arg5: memref<1x128xf32, #tpu.memory_space<vmem>>, %arg6: memref<16x1xf32, #tpu.memory_space<vmem>>, %arg7: memref<16x1xi32, #tpu.memory_space<vmem>>, %arg8: memref<1x1xf32, #tpu.memory_space<smem>>, %arg9: memref<1xi32, #tpu.memory_space<smem>>, %arg10: memref<16x128xf32, #tpu.memory_space<vmem>>) attributes {dimension_semantics = [#tpu.dimension_semantics<parallel>, #tpu.dimension_semantics<parallel>, #tpu.dimension_semantics<arbitrary>], iteration_bounds = array<i64: 1, 1, 1>, scalar_prefetch = 0 : i64, scratch_operands = 0 : i64, tpu.core_type = #tpu.core_type<tc>, window_params = [{transform_indices = @transform_0, window_bounds = array<i64: 16, 128>}, {transform_indices = @transform_1, window_bounds = array<i64: 128, 128>}, {transform_indices = @transform_2, window_bounds = array<i64: 1, 128>}, {transform_indices = @transform_3, window_bounds = array<i64: 16, 1>}, {transform_indices = @transform_4, window_bounds = array<i64: 16, 1>}, {transform_indices = @transform_5, window_bounds = array<i64: 1, 1>}, {transform_indices = @transform_6, window_bounds = array<i64: 1>}, {transform_indices = @transform_7, window_bounds = array<i64: 16, 128>}]} {
    %c0_i32 = arith.constant 0 : i32
    %0 = arith.cmpi eq, %arg2, %c0_i32 : i32
    %c0_i32_0 = arith.constant 0 : i32
    %1 = arith.cmpi eq, %arg2, %c0_i32_0 : i32
    %c128_i32 = arith.constant 128 : i32
    %2 = arith.muli %arg1, %c128_i32 : i32
    %c1_i32 = arith.constant 1 : i32
    %3 = arith.muli %arg0, %c1_i32 : i32
    %4 = arith.addi %3, %arg1 : i32
    %5 = arith.index_cast %4 : i32 to index
    %6 = memref.load %arg9[%5] : memref<1xi32, #tpu.memory_space<smem>>
    %c0_i32_1 = arith.constant 0 : i32
    %7 = arith.cmpi ne, %6, %c0_i32_1 : i32
    %8 = arith.extui %0 : i1 to i32
    %c0_i32_2 = arith.constant 0 : i32
    %9 = arith.cmpi ne, %8, %c0_i32_2 : i32
    scf.if %9 {
      %cst_11 = arith.constant 0.000000e+00 : f32
      %19 = vector.broadcast %cst_11 : f32 to vector<16x128xf32>
      %c0_12 = arith.constant 0 : index
      %c0_13 = arith.constant 0 : index
      %20 = vector.load %arg10[%c0_12, %c0_13] : memref<16x128xf32, #tpu.memory_space<vmem>>, vector<16x128xf32>
      tpu.vector_store %arg10[%c0_12, %c0_13], %19 {strides = array<i32>} : memref<16x128xf32, #tpu.memory_space<vmem>>, vector<16x128xf32>,
    } else {
    }
    %c0 = arith.constant 0 : index
    %c0_3 = arith.constant 0 : index
    %10 = vector.load %arg10[%c0, %c0_3] : memref<16x128xf32, #tpu.memory_space<vmem>>, vector<16x128xf32>
    %c0_4 = arith.constant 0 : index
    %c0_5 = arith.constant 0 : index
    %11 = vector.load %arg3[%c0_4, %c0_5] : memref<16x128xbf16, #tpu.memory_space<vmem>>, vector<16x128xbf16>
    %c0_6 = arith.constant 0 : index
    %c0_7 = arith.constant 0 : index
    %12 = vector.load %arg4[%c0_6, %c0_7] : memref<128x128xbf16, #tpu.memory_space<vmem>>, vector<128x128xbf16>
    %cst = arith.constant dense<0.000000e+00> : vector<16x128xf32>
    %13 = tpu.matmul %11, %12, %cst {dimension_numbers = #tpu.dot_dimension_numbers<[1], [0], [0], [1], [0, 0, 1, 1], [], []>} : vector<16x128xbf16>, vector<128x128xbf16>, vector<16x128xf32> -> vector<16x128xf32>
    %14 = arith.addf %10, %13 : vector<16x128xf32>
    %c0_8 = arith.constant 0 : index
    %c0_9 = arith.constant 0 : index
    %15 = vector.load %arg10[%c0_8, %c0_9] : memref<16x128xf32, #tpu.memory_space<vmem>>, vector<16x128xf32>
    tpu.vector_store %arg10[%c0_8, %c0_9], %14 {strides = array<i32>} : memref<16x128xf32, #tpu.memory_space<vmem>>, vector<16x128xf32>,
    %16 = arith.andi %1, %7 : i1
    %17 = arith.extui %16 : i1 to i32
    %c0_i32_10 = arith.constant 0 : i32
    %18 = arith.cmpi ne, %17, %c0_i32_10 : i32
    scf.if %18 {
      %c0_11 = arith.constant 0 : index
      %c0_12 = arith.constant 0 : index
      %19 = vector.load %arg10[%c0_11, %c0_12] : memref<16x128xf32, #tpu.memory_space<vmem>>, vector<16x128xf32>
      %20 = tpu.iota {dimensions = array<i32: 1>} : vector<16x128xi32>
      %21 = vector.broadcast %2 : i32 to vector<16x128xi32>
      %22 = arith.addi %20, %21 : vector<16x128xi32>
      %c0_13 = arith.constant 0 : index
      %c0_14 = arith.constant 0 : index
      %23 = vector.load %arg7[%c0_13, %c0_14] : memref<16x1xi32, #tpu.memory_space<vmem>>, vector<16x1xi32>
      %24 = vector.broadcast %23 : vector<16x1xi32> to vector<16x128xi32>
      %25 = arith.cmpi eq, %22, %24 : vector<16x128xi32>
      %c0_15 = arith.constant 0 : index
      %c0_16 = arith.constant 0 : index
      %26 = vector.load %arg6[%c0_15, %c0_16] : memref<16x1xf32, #tpu.memory_space<vmem>>, vector<16x1xf32>
      %c0_17 = arith.constant 0 : index
      %c0_18 = arith.constant 0 : index
      %27 = vector.load %arg5[%c0_17, %c0_18] : memref<1x128xf32, #tpu.memory_space<vmem>>, vector<1x128xf32>
      %cst_19 = arith.constant 0.000000e+00 : f32
      %28 = vector.broadcast %cst_19 : f32 to vector<16x128xf32>
      %29 = arith.select %25, %19, %28 : vector<16x128xi1>, vector<16x128xf32>
      %cst_20 = arith.constant dense<0.000000e+00> : vector<16xf32>
      %30 = vector.multi_reduction <add>, %29, %cst_20 [1] : vector<16x128xf32> to vector<16xf32>
      %31 = vector.shape_cast %30 : vector<16xf32> to vector<16x1xf32>
      %cst_21 = arith.constant 0.000000e+00 : f32
      %32 = vector.shape_cast %27 : vector<1x128xf32> to vector<1x128xf32>
      %33 = vector.broadcast %32 : vector<1x128xf32> to vector<16x128xf32>
      %34 = vector.broadcast %cst_21 : f32 to vector<16x128xf32>
      %35 = arith.select %25, %33, %34 : vector<16x128xi1>, vector<16x128xf32>
      %cst_22 = arith.constant dense<0.000000e+00> : vector<16xf32>
      %36 = vector.multi_reduction <add>, %35, %cst_22 [1] : vector<16x128xf32> to vector<16xf32>
      %37 = vector.shape_cast %36 : vector<16xf32> to vector<16x1xf32>
      %38 = arith.mulf %37, %26 : vector<16x1xf32>
      %cst_23 = arith.constant 1.000000e-10 : f32
      %39 = vector.broadcast %cst_23 : f32 to vector<16x1xf32>
      %40 = arith.addf %38, %39 : vector<16x1xf32>
      %41 = arith.divf %31, %40 : vector<16x1xf32>
      %cst_24 = arith.constant -0.99999988 : f32
      %cst_25 = arith.constant 0.99999988 : f32
      %42 = vector.broadcast %cst_24 : f32 to vector<16x1xf32>
      %43 = arith.maximumf %42, %41 : vector<16x1xf32>
      %44 = vector.broadcast %cst_25 : f32 to vector<16x1xf32>
      %45 = arith.minimumf %44, %43 : vector<16x1xf32>
      %46 = arith.mulf %45, %45 : vector<16x1xf32>
      %cst_26 = arith.constant 1.000000e+00 : f32
      %47 = vector.broadcast %cst_26 : f32 to vector<16x1xf32>
      %48 = arith.subf %47, %46 : vector<16x1xf32>
      %cst_27 = arith.constant 0.000000e+00 : f32
      %49 = vector.broadcast %cst_27 : f32 to vector<16x1xf32>
      %50 = arith.mulf %45, %45 : vector<16x1xf32>
      %51 = arith.mulf %50, %50 : vector<16x1xf32>
      %cst_28 = arith.constant 1.000000e+00 : f32
      %52 = vector.broadcast %cst_28 : f32 to vector<16x1xf32>
      %53 = arith.mulf %52, %51 : vector<16x1xf32>
      %cst_29 = arith.constant 1.000000e+00 : f32
      %54 = vector.broadcast %cst_29 : f32 to vector<16x1xf32>
      %55 = arith.mulf %53, %54 : vector<16x1xf32>
      %56 = arith.addf %49, %55 : vector<16x1xf32>
      %57 = arith.mulf %45, %45 : vector<16x1xf32>
      %cst_30 = arith.constant -6.000000e+00 : f32
      %58 = vector.broadcast %cst_30 : f32 to vector<16x1xf32>
      %59 = arith.mulf %58, %57 : vector<16x1xf32>
      %60 = arith.mulf %59, %48 : vector<16x1xf32>
      %61 = arith.addf %56, %60 : vector<16x1xf32>
      %cst_31 = arith.constant 1.000000e+00 : f32
      %62 = vector.broadcast %cst_31 : f32 to vector<16x1xf32>
      %cst_32 = arith.constant 1.000000e+00 : f32
      %63 = vector.broadcast %cst_32 : f32 to vector<16x1xf32>
      %64 = arith.mulf %63, %62 : vector<16x1xf32>
      %65 = arith.mulf %48, %48 : vector<16x1xf32>
      %66 = arith.mulf %64, %65 : vector<16x1xf32>
      %67 = arith.addf %61, %66 : vector<16x1xf32>
      %cst_33 = arith.constant 0.000000e+00 : f32
      %68 = vector.broadcast %cst_33 : f32 to vector<16x1xf32>
      %cst_34 = arith.constant 1.000000e+00 : f32
      %69 = vector.broadcast %cst_34 : f32 to vector<16x1xf32>
      %cst_35 = arith.constant 0.707106769 : f32
      %70 = vector.broadcast %cst_35 : f32 to vector<16x1xf32>
      %71 = arith.cmpf ole, %45, %70 : vector<16x1xf32>
      %cst_36 = arith.constant 1.000000e+00 : f32
      %cst_37 = arith.constant 0.000000e+00 : f32
      %72 = vector.broadcast %cst_36 : f32 to vector<16x1xf32>
      %73 = vector.broadcast %cst_37 : f32 to vector<16x1xf32>
      %74 = arith.select %71, %72, %73 : vector<16x1xi1>, vector<16x1xf32>
      %75 = arith.addf %68, %74 : vector<16x1xf32>
      %cst_38 = arith.constant 0.000000e+00 : f32
      %76 = vector.broadcast %cst_38 : f32 to vector<16x1xf32>
      %77 = arith.subf %76, %69 : vector<16x1xf32>
      %78 = arith.select %71, %77, %69 : vector<16x1xi1>, vector<16x1xf32>
      %cst_39 = arith.constant 6.12323426E-17 : f32
      %79 = vector.broadcast %cst_39 : f32 to vector<16x1xf32>
      %80 = arith.cmpf ole, %45, %79 : vector<16x1xf32>
      %cst_40 = arith.constant 1.000000e+00 : f32
      %cst_41 = arith.constant 0.000000e+00 : f32
      %81 = vector.broadcast %cst_40 : f32 to vector<16x1xf32>
      %82 = vector.broadcast %cst_41 : f32 to vector<16x1xf32>
      %83 = arith.select %80, %81, %82 : vector<16x1xi1>, vector<16x1xf32>
      %84 = arith.addf %75, %83 : vector<16x1xf32>
      %cst_42 = arith.constant 0.000000e+00 : f32
      %85 = vector.broadcast %cst_42 : f32 to vector<16x1xf32>
      %86 = arith.subf %85, %78 : vector<16x1xf32>
      %87 = arith.select %80, %86, %78 : vector<16x1xi1>, vector<16x1xf32>
      %cst_43 = arith.constant -0.707106769 : f32
      %88 = vector.broadcast %cst_43 : f32 to vector<16x1xf32>
      %89 = arith.cmpf ole, %45, %88 : vector<16x1xf32>
      %cst_44 = arith.constant 1.000000e+00 : f32
      %cst_45 = arith.constant 0.000000e+00 : f32
      %90 = vector.broadcast %cst_44 : f32 to vector<16x1xf32>
      %91 = vector.broadcast %cst_45 : f32 to vector<16x1xf32>
      %92 = arith.select %89, %90, %91 : vector<16x1xi1>, vector<16x1xf32>
      %93 = arith.addf %84, %92 : vector<16x1xf32>
      %cst_46 = arith.constant 0.000000e+00 : f32
      %94 = vector.broadcast %cst_46 : f32 to vector<16x1xf32>
      %95 = arith.subf %94, %87 : vector<16x1xf32>
      %96 = arith.select %89, %95, %87 : vector<16x1xi1>, vector<16x1xf32>
      %97 = arith.mulf %96, %67 : vector<16x1xf32>
      %cst_47 = arith.constant 2.000000e+00 : f32
      %98 = vector.broadcast %cst_47 : f32 to vector<16x1xf32>
      %99 = arith.mulf %98, %93 : vector<16x1xf32>
      %100 = arith.subf %97, %99 : vector<16x1xf32>
      %101 = arith.mulf %38, %100 : vector<16x1xf32>
      %c0_48 = arith.constant 0 : index
      %c0_49 = arith.constant 0 : index
      %102 = memref.load %arg8[%c0_48, %c0_49] : memref<1x1xf32, #tpu.memory_space<smem>>
      %103 = vector.broadcast %102 : f32 to vector<16x1xf32>
      %104 = arith.mulf %103, %31 : vector<16x1xf32>
      %105 = arith.addf %101, %104 : vector<16x1xf32>
      %cst_50 = arith.constant 1.000000e+00 : f32
      %106 = arith.addf %cst_50, %102 : f32
      %107 = vector.broadcast %106 : f32 to vector<16x1xf32>
      %108 = arith.divf %105, %107 : vector<16x1xf32>
      %109 = vector.shape_cast %108 : vector<16x1xf32> to vector<16x1xf32>
      %110 = vector.broadcast %109 : vector<16x1xf32> to vector<16x128xf32>
      %111 = arith.select %25, %110, %19 : vector<16x128xi1>, vector<16x128xf32>
      %c0_51 = arith.constant 0 : index
      %c0_52 = arith.constant 0 : index
      %112 = vector.load %arg10[%c0_51, %c0_52] : memref<16x128xf32, #tpu.memory_space<vmem>>, vector<16x128xf32>
      tpu.vector_store %arg10[%c0_51, %c0_52], %111 {strides = array<i32>} : memref<16x128xf32, #tpu.memory_space<vmem>>, vector<16x128xf32>,
    } else {
    }
    return
  }
  func.func @transform_0(%arg0: i32, %arg1: i32, %arg2: i32) -> (i32, i32) {
    %c0_i32 = arith.constant 0 : i32
    return %arg0, %arg2 : i32, i32
  }
  func.func @transform_1(%arg0: i32, %arg1: i32, %arg2: i32) -> (i32, i32) {
    %c0_i32 = arith.constant 0 : i32
    return %arg2, %arg1 : i32, i32
  }
  func.func @transform_2(%arg0: i32, %arg1: i32, %arg2: i32) -> (i32, i32) {
    %c0_i32 = arith.constant 0 : i32
    %c0_i32_0 = arith.constant 0 : i32
    return %c0_i32, %arg1 : i32, i32
  }
  func.func @transform_3(%arg0: i32, %arg1: i32, %arg2: i32) -> (i32, i32) {
    %c0_i32 = arith.constant 0 : i32
    %c0_i32_0 = arith.constant 0 : i32
    return %arg0, %c0_i32 : i32, i32
  }
  func.func @transform_4(%arg0: i32, %arg1: i32, %arg2: i32) -> (i32, i32) {
    %c0_i32 = arith.constant 0 : i32
    %c0_i32_0 = arith.constant 0 : i32
    return %arg0, %c0_i32 : i32, i32
  }
  func.func @transform_5(%arg0: i32, %arg1: i32, %arg2: i32) -> (i32, i32) {
    %c0_i32 = arith.constant 0 : i32
    %c0_i32_0 = arith.constant 0 : i32
    %c0_i32_1 = arith.constant 0 : i32
    return %c0_i32, %c0_i32_0 : i32, i32
  }
  func.func @transform_6(%arg0: i32, %arg1: i32, %arg2: i32) -> i32 {
    %c0_i32 = arith.constant 0 : i32
    %c0_i32_0 = arith.constant 0 : i32
    return %c0_i32 : i32
  }
  func.func @transform_7(%arg0: i32, %arg1: i32, %arg2: i32) -> (i32, i32) {
    %c0_i32 = arith.constant 0 : i32
    return %arg0, %arg1 : i32, i32
  }
}

</mosaic_0001>

<llo_original>
// kernel: tpu_custom_call.1
$region0: #{tpu_custom_call.1}
  #allocation0 [shape = 'u32[]', space=smem, size = 0x4, offset = 0x4, fixed_abs, tag = 'smem constant byte address 0x4 - core index']
  #allocation1 [shape = 'u32[144,128]{1,0:T(1,128)}', space=vmem, size = 0x12000, scoped, tag = 'internal scratch']
  #allocation2 [shape = 'f32[1,1]{1,0:T(1,128)S(6)}', space=smem, size = 0x200, scoped, tag = 'scoped memory for tpu_custom_call.1']
  #allocation3 [shape = 's32[1]{0:T(128)S(6)}', space=smem, size = 0x200, scoped, tag = 'scoped memory for tpu_custom_call.1']
  %s0 = inlined_call_operand.vmem [shape: bf16[16,128], index: 0, kind: input, shape index: {}]
  %s1 = inlined_call_operand.hbm [shape: bf16[128,128], index: 1, kind: input, shape index: {}]
  %s2 = inlined_call_operand.vmem [shape: f32[1,128], index: 2, kind: input, shape index: {}]
  %s3 = inlined_call_operand.vmem [shape: f32[16,1], index: 3, kind: input, shape index: {}]
  %s4 = inlined_call_operand.vmem [shape: s32[16,1], index: 4, kind: input, shape index: {}]
  %s5 = inlined_call_operand.<no memory space> [shape: f32[1,1], index: 5, kind: input, shape index: {}]
  %s6 = inlined_call_operand.<no memory space> [shape: s32[1], index: 6, kind: input, shape index: {}]
  %s7 = inlined_call_operand.hbm [shape: f32[16,128], index: 7, kind: output, shape index: {}]
  %s8 = sld [smem:[#allocation0]]
  $region50: #{tpu_custom_call.1} parent=0
    _
  %s10 = ssub.s32 1, %s8
  %s11 = scalar_select 0, %s10, %s8
  %12 = sst [smem:[#allocation2]] %s5
  %13 = sst [smem:[#allocation3]] %s6
  $region1: #{tpu_custom_call.1} parent=0
    #allocation4 [shape = 'u8[32768]{0}', space=vmem, size = 0x8000, scoped, tag = 'input window, operand 1, single buffered']
    #allocation5 [shape = 's32[1]{0}', space=sflag, size = 0x4, scoped, tag = 'scoped memory for tpu_custom_call.1']
    #allocation6 [shape = 's32[1]{0}', space=sflag, size = 0x4, scoped, tag = 'scoped memory for tpu_custom_call.1']
    #allocation7 [shape = 'u8[8192]{0}', space=vmem, size = 0x2000, scoped, tag = 'output window, operand 0, single buffered']
    %14 = vsyncpa [#allocation5], 0
    %15 = vsyncpa [#allocation6], 0
    // Predicated region
    $region2: #{tpu_custom_call.1} parent=1 // pred_check
      _
    $region3: #{tpu_custom_call.1} parent=1 // pred_check_branch
      %17 = sbr.rel (0) target = $region5
    $region4: #{tpu_custom_call.1} parent=1 // pred_region
      _
    $region5: #{tpu_custom_call.1} parent=1 // pred_fallthru
      _
    // Predicated region
    $region6: #{tpu_custom_call.1} parent=1 // pred_check
      _
    $region7: #{tpu_custom_call.1} parent=1 // pred_check_branch
      %19 = sbr.rel (0) target = $region9
    $region8: #{tpu_custom_call.1} parent=1 // pred_region
      %s21 = ssub.s32 1024, 1024
      %22 = vsyncadd [#allocation5], %s21
      %s23 = sshll.u32 [#allocation4], 4
      %s24 = int_to_ptr.vmem [resolvable:$true] %s23
      %29 = dma.hbm_to_vmem [thread:$0]  %s1, 1024, %s24, [#allocation5], 64, 64, 4
    $region9: #{tpu_custom_call.1} parent=1 // pred_fallthru
      _
    // Predicated region
    $region10: #{tpu_custom_call.1} parent=1 // pred_check
      _
    $region11: #{tpu_custom_call.1} parent=1 // pred_check_branch
      %31 = sbr.rel (0) target = $region13
    $region12: #{tpu_custom_call.1} parent=1 // pred_region
      _
    $region13: #{tpu_custom_call.1} parent=1 // pred_fallthru
      _
    // Predicated region
    $region14: #{tpu_custom_call.1} parent=1 // pred_check
      _
    $region15: #{tpu_custom_call.1} parent=1 // pred_check_branch
      %33 = sbr.rel (0) target = $region17
    $region16: #{tpu_custom_call.1} parent=1 // pred_region
      _
    $region17: #{tpu_custom_call.1} parent=1 // pred_fallthru
      _
    // Predicated region
    $region18: #{tpu_custom_call.1} parent=1 // pred_check
      _
    $region19: #{tpu_custom_call.1} parent=1 // pred_check_branch
      %35 = sbr.rel (0) target = $region21
    $region20: #{tpu_custom_call.1} parent=1 // pred_region
      _
    $region21: #{tpu_custom_call.1} parent=1 // pred_fallthru
      _
    // Predicated region
    $region22: #{tpu_custom_call.1} parent=1 // pred_check
      _
    $region23: #{tpu_custom_call.1} parent=1 // pred_check_branch
      %37 = sbr.rel (0) target = $region25
    $region24: #{tpu_custom_call.1} parent=1 // pred_region
      _
    $region25: #{tpu_custom_call.1} parent=1 // pred_fallthru
      _
    // Predicated region
    $region26: #{tpu_custom_call.1} parent=1 // pred_check
      _
    $region27: #{tpu_custom_call.1} parent=1 // pred_check_branch
      %39 = sbr.rel (0) target = $region29
    $region28: #{tpu_custom_call.1} parent=1 // pred_region
      _
    $region29: #{tpu_custom_call.1} parent=1 // pred_fallthru
      _
    // Predicated region
    $region30: #{tpu_custom_call.1} parent=1 // pred_check
      _
    $region31: #{tpu_custom_call.1} parent=1 // pred_check_branch
      %41 = sbr.rel (0) target = $region33
    $region32: #{tpu_custom_call.1} parent=1 // pred_region
      %42 = dma.done [#allocation5], 1024
    $region33: #{tpu_custom_call.1} parent=1 // pred_fallthru
      _
    %p44 = scmp.eq.s32.totalorder 0, 0
    %s45 = smul.u32 0, 128
    %s46 = sadd.s32 0, 0
    %s47 = sld [smem:[#allocation3 + %s46]]
    %p48 = scmp.ne.s32.totalorder %s47, 0
    // Predicated region
    $region34: #{tpu_custom_call.1} parent=1 // pred_check
      %p49 = pneg %p44
    $region35: #{tpu_custom_call.1} parent=1 // pred_check_branch
      %51 = sbr.rel (%p49) target = $region37
    $region36: #{tpu_custom_call.1} parent=1 // pred_region
      %52 = vst [vmem:[#allocation7] sm:$0xff] 0.0
      %53 = vst [vmem:[#allocation7 + $0x8] sm:$0xff] 0.0
    $region37: #{tpu_custom_call.1} parent=1 // pred_fallthru
      _
    %v54 = vld [vmem:[#allocation7] sm:$0xff]
    %v55 = vld [vmem:[#allocation7 + $0x8] sm:$0xff]
    %v56 = vld [vmem:[%s0] sm:$0xf]
    %v57 = vld [vmem:[%s0 + $0x4] sm:$0xf]
    %v58 = vld [vmem:[#allocation4] sm:$0xf]
    %v59 = vld [vmem:[#allocation4 + $0x4] sm:$0xf]
    %v60 = vld [vmem:[#allocation4 + $0x8] sm:$0xf]
    %v61 = vld [vmem:[#allocation4 + $0xc] sm:$0xf]
    %v62 = vld [vmem:[#allocation4 + $0x10] sm:$0xf]
    %v63 = vld [vmem:[#allocation4 + $0x14] sm:$0xf]
    %v64 = vld [vmem:[#allocation4 + $0x18] sm:$0xf]
    %v65 = vld [vmem:[#allocation4 + $0x1c] sm:$0xf]
    %v66 = vld [vmem:[#allocation4 + $0x20] sm:$0xf]
    %v67 = vld [vmem:[#allocation4 + $0x24] sm:$0xf]
    %v68 = vld [vmem:[#allocation4 + $0x28] sm:$0xf]
    %v69 = vld [vmem:[#allocation4 + $0x2c] sm:$0xf]
    %v70 = vld [vmem:[#allocation4 + $0x30] sm:$0xf]
    %v71 = vld [vmem:[#allocation4 + $0x34] sm:$0xf]
    %v72 = vld [vmem:[#allocation4 + $0x38] sm:$0xf]
    %v73 = vld [vmem:[#allocation4 + $0x3c] sm:$0xf]
    %v76 = vunpack.c.l.b16 %v56
    %v77 = vunpack.c.l.b16 %v57
    %v78 = vpack.c.b16 %v77, %v76
    %v96 = vunpack.c.l.b16 %v58
    %v97 = vunpack.c.l.b16 %v59
    %v98 = vunpack.c.l.b16 %v60
    %v99 = vunpack.c.l.b16 %v61
    %v100 = vunpack.c.l.b16 %v62
    %v101 = vunpack.c.l.b16 %v63
    %v102 = vunpack.c.l.b16 %v64
    %v103 = vunpack.c.l.b16 %v65
    %v104 = vunpack.c.l.b16 %v66
    %v105 = vunpack.c.l.b16 %v67
    %v106 = vunpack.c.l.b16 %v68
    %v107 = vunpack.c.l.b16 %v69
    %v108 = vunpack.c.l.b16 %v70
    %v109 = vunpack.c.l.b16 %v71
    %v110 = vunpack.c.l.b16 %v72
    %v111 = vunpack.c.l.b16 %v73
    %v112 = vpack.c.b16 %v97, %v96
    %v113 = vpack.c.b16 %v99, %v98
    %v114 = vpack.c.b16 %v101, %v100
    %v115 = vpack.c.b16 %v103, %v102
    %v116 = vpack.c.b16 %v105, %v104
    %v117 = vpack.c.b16 %v107, %v106
    %v118 = vpack.c.b16 %v109, %v108
    %v119 = vpack.c.b16 %v111, %v110
    %128 = vmatprep.subr.bf16.mxu0 0
    %129 = vmatpush1.bf16.msra.mxu0 %v112
    %130 = vmatprep.subr.bf16.mxu0 0
    %131 = vmatpush1.bf16.msra.mxu0 %v113
    %132 = vmatprep.subr.bf16.mxu0 0
    %133 = vmatpush1.bf16.msra.mxu0 %v114
    %134 = vmatprep.subr.bf16.mxu0 0
    %135 = vmatpush1.bf16.msra.mxu0 %v115
    %136 = vmatprep.subr.bf16.mxu0 0
    %137 = vmatpush1.bf16.msra.mxu0 %v116
    %138 = vmatprep.subr.bf16.mxu0 0
    %139 = vmatpush1.bf16.msra.mxu0 %v117
    %140 = vmatprep.subr.bf16.mxu0 0
    %141 = vmatpush1.bf16.msra.mxu0 %v118
    %142 = vmatprep.subr.bf16.mxu0 0
    %143 = vmatpush1.bf16.msra.mxu0 %v119
    %144 = vmatprep.subr.bf16.mxu0 0
    %145 = vmatpush1.bf16.msra.mxu0 0
    %146 = vmatprep.subr.bf16.mxu0 0
    %147 = vmatpush1.bf16.msra.mxu0 0
    %148 = vmatprep.subr.bf16.mxu0 0
    %149 = vmatpush1.bf16.msra.mxu0 0
    %150 = vmatprep.subr.bf16.mxu0 0
    %151 = vmatpush1.bf16.msra.mxu0 0
    %152 = vmatprep.subr.bf16.mxu0 0
    %153 = vmatpush1.bf16.msra.mxu0 0
    %154 = vmatprep.subr.bf16.mxu0 0
    %155 = vmatpush1.bf16.msra.mxu0 0
    %156 = vmatprep.subr.bf16.mxu0 0
    %157 = vmatpush1.bf16.msra.mxu0 0
    %158 = vmatprep.subr.bf16.mxu0 0
    %159 = vmatpush1.bf16.msra.mxu0 0
    %160 = vmatprep.mubr.bf16.mxu0 0
    %161 = vmatmul.mubr.bf16.gmra.mrb[0].mxu0 %v78
    %v162 = vpop.f32.mrb[0].mxu0
    %v163 = vadd.f32 0.0, %v162
    %v164 = vpop.f32.mrb[0].mxu0
    %v165 = vpop.f32.mrb[0].mxu0
    %v166 = vadd.f32 0.0, %v165
    %v167 = vpop.f32.mrb[0].mxu0
    %168 = vdwg.mxu0
    %v169 = vadd.f32 %v54, %v163
    %v170 = vadd.f32 %v55, %v166
    %171 = vst [vmem:[#allocation7] sm:$0xff] %v169
    %172 = vst [vmem:[#allocation7 + $0x8] sm:$0xff] %v170
    %p173 = pnand %p44, %p48
    %p174 = pneg %p173
    // Predicated region
    $region38: #{tpu_custom_call.1} parent=1 // pred_check
      _
    $region39: #{tpu_custom_call.1} parent=1 // pred_check_branch
      %176 = sbr.rel (%p173) target = $region41
    $region40: #{tpu_custom_call.1} parent=1 // pred_region
      %v177 = vld [vmem:[#allocation7] sm:$0xff]
      %v178 = vld [vmem:[#allocation7 + $0x8] sm:$0xff]
      %v179 = vlaneseq
      %v180 = vand.u32 %v179, 127
      %v181 = vstv %s45
      %v182 = vadd.s32 %v180, %v181
      %v183 = vld [vmem:[%s4] sm:$0xff]
      %v184 = vld [vmem:[%s4 + $0x8] sm:$0xff]
      %185 = vset.pattern.permute.xlu0 0
      %186 = vperm.xlu0 %185, %v183
      %v187 = vpop.permute.xlu0 %186
      %188 = vset.pattern.permute.xlu0 0
      %189 = vperm.xlu0 %188, %v184
      %v190 = vpop.permute.xlu0 %189
      %vm191 = vcmp.eq.s32.totalorder %v182, %v187
      %vm192 = vcmp.eq.s32.totalorder %v182, %v190
      %v193 = vld [vmem:[%s3] sm:$0xff]
      %v194 = vld [vmem:[%s3 + $0x8] sm:$0xff]
      %v195 = vld [vmem:[%s2] sm:$0x1]
      %v196 = vsel %vm191, %v177, 0.0
      %v197 = vsel %vm192, %v178, 0.0
      %198 = vadd.xlane.f32.xlu0 %v196
      %v199 = vpop.xlane.xlu0 %198
      %200 = vadd.xlane.f32.xlu0 %v197
      %v201 = vpop.xlane.xlu0 %200
      %v203 = vlaneseq
      %v204 = vshrl.u32 %v203, 7
      %v205 = vsub.s32 0, %v204
      %v206 = vrot.slane %v195, %v205
      %v208 = vsel %vm191, %v206, 0.0
      %v209 = vsel %vm192, %v206, 0.0
      %210 = vadd.xlane.f32.xlu0 %v208
      %v211 = vpop.xlane.xlu0 %210
      %212 = vadd.xlane.f32.xlu0 %v209
      %v213 = vpop.xlane.xlu0 %212
      %v214 = vmul.f32 %v211, %v193
      %v215 = vmul.f32 %v213, %v194
      %v216 = vadd.f32 %v214, 1e-10
      %v217 = vadd.f32 %v215, 1e-10
      %v218 = vrcp.pop %v216
      %v219 = vmul.f32 %v199, %v218
      %v220 = vrcp.pop %v217
      %v221 = vmul.f32 %v201, %v220
      %v222 = vmax.f32 %v219, -0.9999999
      %v223 = vmax.f32 %v221, -0.9999999
      %v224 = vmin.f32 %v222, 0.9999999
      %v225 = vmin.f32 %v223, 0.9999999
      %v226 = vmul.f32 %v224, %v224
      %v227 = vmul.f32 %v225, %v225
      %v228 = vsub.f32 1.0, %v226
      %v229 = vsub.f32 1.0, %v227
      %v230 = vmul.f32 %v226, %v226
      %v231 = vmul.f32 %v227, %v227
      %v232 = vadd.f32 %v230, 0.0
      %v233 = vadd.f32 %v231, 0.0
      %v234 = vmul.f32 %v226, -6.0
      %v235 = vmul.f32 %v227, -6.0
      %v236 = vmul.f32 %v234, %v228
      %v237 = vmul.f32 %v235, %v229
      %v238 = vadd.f32 %v232, %v236
      %v239 = vadd.f32 %v233, %v237
      %v240 = vmul.f32 %v228, %v228
      %v241 = vmul.f32 %v229, %v229
      %v242 = vadd.f32 %v238, %v240
      %v243 = vadd.f32 %v239, %v241
      %vm244 = vcmp.le.f32.partialorder %v224, 0.70710677
      %vm245 = vcmp.le.f32.partialorder %v225, 0.70710677
      %v246 = vsel %vm244, 1.0, 0.0
      %v247 = vsel %vm245, 1.0, 0.0
      %v248 = vadd.f32 %v246, 0.0
      %v249 = vadd.f32 %v247, 0.0
      %v250 = vsel %vm244, -1.0, 1.0
      %v251 = vsel %vm245, -1.0, 1.0
      %vm252 = vcmp.le.f32.partialorder %v224, 6.123234e-17
      %vm253 = vcmp.le.f32.partialorder %v225, 6.123234e-17
      %v254 = vsel %vm252, 1.0, 0.0
      %v255 = vsel %vm253, 1.0, 0.0
      %v256 = vadd.f32 %v248, %v254
      %v257 = vadd.f32 %v249, %v255
      %v258 = vsub.f32 0.0, %v250
      %v259 = vsub.f32 0.0, %v251
      %v260 = vsel %vm252, %v258, %v250
      %v261 = vsel %vm253, %v259, %v251
      %vm262 = vcmp.le.f32.partialorder %v224, -0.70710677
      %vm263 = vcmp.le.f32.partialorder %v225, -0.70710677
      %v264 = vsel %vm262, 1.0, 0.0
      %v265 = vsel %vm263, 1.0, 0.0
      %v266 = vadd.f32 %v256, %v264
      %v267 = vadd.f32 %v257, %v265
      %v268 = vsub.f32 0.0, %v260
      %v269 = vsub.f32 0.0, %v261
      %v270 = vsel %vm262, %v268, %v260
      %v271 = vsel %vm263, %v269, %v261
      %v272 = vmul.f32 %v270, %v242
      %v273 = vmul.f32 %v271, %v243
      %v274 = vmul.f32 %v266, 2.0
      %v275 = vmul.f32 %v267, 2.0
      %v276 = vsub.f32 %v272, %v274
      %v277 = vsub.f32 %v273, %v275
      %v278 = vmul.f32 %v214, %v276
      %v279 = vmul.f32 %v215, %v277
      %s280 = sld [smem:[#allocation2]]
      %v281 = vstv %s280
      %v282 = vmul.f32 %v281, %v199
      %v283 = vmul.f32 %v281, %v201
      %v284 = vadd.f32 %v278, %v282
      %v285 = vadd.f32 %v279, %v283
      %s286 = sadd.f32 %s280, 1.0
      %v287 = vstv %s286
      %v288 = vrcp.pop %v287
      %v289 = vmul.f32 %v284, %v288
      %v290 = vmul.f32 %v285, %v288
      %292 = vset.pattern.permute.xlu0 0
      %293 = vperm.xlu0 %292, %v289
      %v294 = vpop.permute.xlu0 %293
      %297 = vset.pattern.permute.xlu0 0
      %298 = vperm.xlu0 %297, %v290
      %v299 = vpop.permute.xlu0 %298
      %v301 = vsel %vm191, %v294, %v177
      %v302 = vsel %vm192, %v299, %v178
      %303 = vst [vmem:[#allocation7] sm:$0xff] %v301
      %304 = vst [vmem:[#allocation7 + $0x8] sm:$0xff] %v302
    $region41: #{tpu_custom_call.1} parent=1 // pred_fallthru
      _
    // Predicated region
    $region42: #{tpu_custom_call.1} parent=1 // pred_check
      _
    $region43: #{tpu_custom_call.1} parent=1 // pred_check_branch
      %306 = sbr.rel (0) target = $region45
    $region44: #{tpu_custom_call.1} parent=1 // pred_region
      %s308 = ssub.s32 256, 256
      %309 = vsyncadd [#allocation6], %s308
      %s310 = sshll.u32 [#allocation7], 4
      %s311 = int_to_ptr.vmem [resolvable:$true] %s310
      %316 = dma.vmem_to_hbm [thread:$0]  %s311, 256, %s7, [#allocation6], 128, 128, 8
    $region45: #{tpu_custom_call.1} parent=1 // pred_fallthru
      _
    // Predicated region
    $region46: #{tpu_custom_call.1} parent=1 // pred_check
      _
    $region47: #{tpu_custom_call.1} parent=1 // pred_check_branch
      %318 = sbr.rel (0) target = $region49
    $region48: #{tpu_custom_call.1} parent=1 // pred_region
      %319 = dma.done [#allocation6], 256
    $region49: #{tpu_custom_call.1} parent=1 // pred_fallthru
      _
    %320 = vsyncpa [#allocation5], 1
    %321 = vsyncpa [#allocation6], 1

</llo_original>
